<compile_context>
chip_gen: v5e
topology: v5e:2x2
jax: 0.10.0
libtpu: 0.0.40
codegen_flags: <defaults>
</compile_context>

<pallas_src>
import jax
import jax.numpy as jnp
from jax import lax
from jax.experimental import pallas as pl
from jax.experimental.pallas import tpu as pltpu


def _round_up(a: int, m: int) -> int:
    return (a + m - 1) // m * m


def orthogonal_kernel(x_ref, w_ref, b_ref, p_ref, o_ref, acc_ref):
    # grid = (batch_tiles, feat_tiles); feat is the reduction axis.
    k = pl.program_id(1)

    @pl.when(k == 0)
    def _():
        acc_ref[...] = jnp.zeros_like(acc_ref)

    # Partial hidden: x tile (tm, tk) contracted with encode-weight tile
    # (P_pad, tk) along the feat dim (no host transpose needed).
    acc_ref[...] += lax.dot_general(
        x_ref[...], w_ref[...],
        dimension_numbers=(((1,), (1,)), ((), ())),
        preferred_element_type=jnp.float32)            # (tm, P_pad) f32

    @pl.when(k == pl.num_programs(1) - 1)
    def _():
        # Epilogue: bias once, then the tiny frozen-proxy matmul, single store.
        hidden = acc_ref[...] + b_ref[...]             # (tm, P_pad)
        out = lax.dot_general(
            hidden.astype(p_ref.dtype), p_ref[...],
            dimension_numbers=(((1,), (1,)), ((), ())),
            preferred_element_type=jnp.float32)        # (tm, C_pad)
        o_ref[...] = out.astype(o_ref.dtype)


def orthogonal_forward(feature, enc_weight, enc_bias, proxy, *, tm=None, tk=None):
    """feature: (B, feat_dim); enc_weight: (proxy_dim, feat_dim);
    enc_bias: (proxy_dim,); proxy: (out_dim, proxy_dim)."""
    B, F = feature.shape
    P, Fw = enc_weight.shape
    C, Pp = proxy.shape
    assert Fw == F and Pp == P

    # Tile sizes (128-aligned; small demo shapes just use full extents).
    if tk is None:
        tk = 512 if F >= 512 else 128
    F_pad = _round_up(F, tk)
    if tm is None:
        tm = 128 if B >= 128 else _round_up(max(B, 1), 8)
    B_pad = _round_up(B, tm)
    # Lane-dense hidden / output widths (multiples of 128).
    P_pad = _round_up(P, 128)
    C_pad = _round_up(C, 128)

    xp = jnp.pad(feature, ((0, B_pad - B), (0, F_pad - F)))
    wp = jnp.pad(enc_weight, ((0, P_pad - P), (0, F_pad - F)))
    bp = jnp.pad(enc_bias.reshape(1, P), ((0, 0), (0, P_pad - P)))
    pp = jnp.pad(proxy, ((0, C_pad - C), (0, P_pad - P)))

    grid = (B_pad // tm, F_pad // tk)

    out = pl.pallas_call(
        orthogonal_kernel,
        out_shape=jax.ShapeDtypeStruct((B_pad, C_pad), feature.dtype),
        grid_spec=pltpu.PrefetchScalarGridSpec(
            num_scalar_prefetch=0,
            grid=grid,
            in_specs=[
                pl.BlockSpec((tm, tk), lambda i, k: (i, k)),       # x tile
                pl.BlockSpec((P_pad, tk), lambda i, k: (0, k)),    # encode W tile
                pl.BlockSpec((1, P_pad), lambda i, k: (0, 0)),     # bias (resident)
                pl.BlockSpec((C_pad, P_pad), lambda i, k: (0, 0)), # proxy (resident)
            ],
            out_specs=pl.BlockSpec((tm, C_pad), lambda i, k: (i, 0)),
            scratch_shapes=[pltpu.VMEM((tm, P_pad), jnp.float32)],
        ),
        compiler_params=pltpu.CompilerParams(
            dimension_semantics=("parallel", "arbitrary")),
    )(xp, wp, bp, pp)

    return out[:B, :C]


def reference(feature, enc_weight, enc_bias, proxy):
    hidden = feature @ enc_weight.T + enc_bias
    return hidden @ proxy.T


if __name__ == "__main__":
    # Small shapes consistent with the module defaults (feat_dim=128..256,
    # class_num=10).  feat_dim=256 / tk=128 exercises the K accumulation loop,
    # batch=16 / tm=8 exercises the parallel batch axis.
    batch, feat_dim, class_num = 16, 256, 10
    proxy_dim = (class_num + 1) // 2            # ceil(class_num / 2)

    key = jax.random.PRNGKey(0)
    kx, kw, kb = jax.random.split(key, 3)

    feature = jax.random.normal(kx, (batch, feat_dim), dtype=jnp.float32)

    # nn.Linear-style uniform init for the encode layer.
    bound = 1.0 / jnp.sqrt(feat_dim)
    enc_weight = jax.random.uniform(kw, (proxy_dim, feat_dim),
                                    minval=-bound, maxval=bound,
                                    dtype=jnp.float32)
    enc_bias = jax.random.uniform(kb, (proxy_dim,),
                                  minval=-bound, maxval=bound,
                                  dtype=jnp.float32)

    # Frozen proxy = [I; -I]  -> (2*proxy_dim, proxy_dim)
    eye = jnp.eye(proxy_dim, dtype=jnp.float32)
    proxy = jnp.concatenate([eye, -eye], axis=0)

    out = orthogonal_forward(feature, enc_weight, enc_bias, proxy)
    out = jax.block_until_ready(out)

    ref = reference(feature, enc_weight, enc_bias, proxy)
    assert out.shape == (batch, 2 * proxy_dim), out.shape
    assert jnp.allclose(out, ref, atol=1e-5, rtol=1e-5), "mismatch vs reference"

    print("KERNEL_OK")
</pallas_src>

<mosaic_0001>
module attributes {stable_mosaic.version = 11 : i64} {
  func.func @orthogonal_kernel(%arg0: i32, %arg1: i32, %arg2: memref<16x128xf32, #tpu.memory_space<vmem>>, %arg3: memref<128x128xf32, #tpu.memory_space<vmem>>, %arg4: memref<1x128xf32, #tpu.memory_space<vmem>>, %arg5: memref<128x128xf32, #tpu.memory_space<vmem>>, %arg6: memref<16x128xf32, #tpu.memory_space<vmem>>, %arg7: memref<16x128xf32, #tpu.memory_space<vmem>>) attributes {dimension_semantics = [#tpu.dimension_semantics<parallel>, #tpu.dimension_semantics<arbitrary>], iteration_bounds = array<i64: 1, 2>, scalar_prefetch = 0 : i64, scratch_operands = 1 : i64, tpu.core_type = #tpu.core_type<tc>, window_params = [{transform_indices = @transform_0, window_bounds = array<i64: 16, 128>}, {transform_indices = @transform_1, window_bounds = array<i64: 128, 128>}, {pipeline_mode = #tpu.pipeline_mode<synchronous>, transform_indices = @transform_2, window_bounds = array<i64: 1, 128>}, {pipeline_mode = #tpu.pipeline_mode<synchronous>, transform_indices = @transform_3, window_bounds = array<i64: 128, 128>}, {transform_indices = @transform_4, window_bounds = array<i64: 16, 128>}]} {
    %c0_i32 = arith.constant 0 : i32
    %0 = arith.cmpi eq, %arg1, %c0_i32 : i32
    %1 = arith.extui %0 : i1 to i32
    %c0_i32_0 = arith.constant 0 : i32
    %2 = arith.cmpi ne, %1, %c0_i32_0 : i32
    scf.if %2 {
      %cst_9 = arith.constant 0.000000e+00 : f32
      %12 = vector.broadcast %cst_9 : f32 to vector<16x128xf32>
      %c0_10 = arith.constant 0 : index
      %c0_11 = arith.constant 0 : index
      %13 = vector.load %arg7[%c0_10, %c0_11] : memref<16x128xf32, #tpu.memory_space<vmem>>, vector<16x128xf32>
      tpu.vector_store %arg7[%c0_10, %c0_11], %12 {strides = array<i32>} : memref<16x128xf32, #tpu.memory_space<vmem>>, vector<16x128xf32>,
    } else {
    }
    %c0 = arith.constant 0 : index
    %c0_1 = arith.constant 0 : index
    %3 = vector.load %arg7[%c0, %c0_1] : memref<16x128xf32, #tpu.memory_space<vmem>>, vector<16x128xf32>
    %c0_2 = arith.constant 0 : index
    %c0_3 = arith.constant 0 : index
    %4 = vector.load %arg2[%c0_2, %c0_3] : memref<16x128xf32, #tpu.memory_space<vmem>>, vector<16x128xf32>
    %c0_4 = arith.constant 0 : index
    %c0_5 = arith.constant 0 : index
    %5 = vector.load %arg3[%c0_4, %c0_5] : memref<128x128xf32, #tpu.memory_space<vmem>>, vector<128x128xf32>
    %cst = arith.constant dense<0.000000e+00> : vector<16x128xf32>
    %6 = tpu.matmul %4, %5, %cst {dimension_numbers = #tpu.dot_dimension_numbers<[1], [1], [0], [0], [0, 0, 1, 0], [], []>} : vector<16x128xf32>, vector<128x128xf32>, vector<16x128xf32> -> vector<16x128xf32>
    %7 = arith.addf %3, %6 : vector<16x128xf32>
    %c0_6 = arith.constant 0 : index
    %c0_7 = arith.constant 0 : index
    %8 = vector.load %arg7[%c0_6, %c0_7] : memref<16x128xf32, #tpu.memory_space<vmem>>, vector<16x128xf32>
    tpu.vector_store %arg7[%c0_6, %c0_7], %7 {strides = array<i32>} : memref<16x128xf32, #tpu.memory_space<vmem>>, vector<16x128xf32>,
    %c1_i32 = arith.constant 1 : i32
    %9 = arith.cmpi eq, %arg1, %c1_i32 : i32
    %10 = arith.extui %9 : i1 to i32
    %c0_i32_8 = arith.constant 0 : i32
    %11 = arith.cmpi ne, %10, %c0_i32_8 : i32
    scf.if %11 {
      %c0_9 = arith.constant 0 : index
      %c0_10 = arith.constant 0 : index
      %12 = vector.load %arg7[%c0_9, %c0_10] : memref<16x128xf32, #tpu.memory_space<vmem>>, vector<16x128xf32>
      %c0_11 = arith.constant 0 : index
      %c0_12 = arith.constant 0 : index
      %13 = vector.load %arg4[%c0_11, %c0_12] : memref<1x128xf32, #tpu.memory_space<vmem>>, vector<1x128xf32>
      %14 = vector.broadcast %13 : vector<1x128xf32> to vector<16x128xf32>
      %15 = arith.addf %12, %14 : vector<16x128xf32>
      %c0_13 = arith.constant 0 : index
      %c0_14 = arith.constant 0 : index
      %16 = vector.load %arg5[%c0_13, %c0_14] : memref<128x128xf32, #tpu.memory_space<vmem>>, vector<128x128xf32>
      %cst_15 = arith.constant dense<0.000000e+00> : vector<16x128xf32>
      %17 = tpu.matmul %15, %16, %cst_15 {dimension_numbers = #tpu.dot_dimension_numbers<[1], [1], [0], [0], [0, 0, 1, 0], [], []>} : vector<16x128xf32>, vector<128x128xf32>, vector<16x128xf32> -> vector<16x128xf32>
      %c0_16 = arith.constant 0 : index
      %c0_17 = arith.constant 0 : index
      %18 = vector.load %arg6[%c0_16, %c0_17] : memref<16x128xf32, #tpu.memory_space<vmem>>, vector<16x128xf32>
      tpu.vector_store %arg6[%c0_16, %c0_17], %17 {strides = array<i32>} : memref<16x128xf32, #tpu.memory_space<vmem>>, vector<16x128xf32>,
    } else {
    }
    return
  }
  func.func @transform_0(%arg0: i32, %arg1: i32) -> (i32, i32) {
    %c0_i32 = arith.constant 0 : i32
    return %arg0, %arg1 : i32, i32
  }
  func.func @transform_1(%arg0: i32, %arg1: i32) -> (i32, i32) {
    %c0_i32 = arith.constant 0 : i32
    %c0_i32_0 = arith.constant 0 : i32
    return %c0_i32, %arg1 : i32, i32
  }
  func.func @transform_2(%arg0: i32, %arg1: i32) -> (i32, i32) {
    %c0_i32 = arith.constant 0 : i32
    %c0_i32_0 = arith.constant 0 : i32
    %c0_i32_1 = arith.constant 0 : i32
    return %c0_i32, %c0_i32_0 : i32, i32
  }
  func.func @transform_3(%arg0: i32, %arg1: i32) -> (i32, i32) {
    %c0_i32 = arith.constant 0 : i32
    %c0_i32_0 = arith.constant 0 : i32
    %c0_i32_1 = arith.constant 0 : i32
    return %c0_i32, %c0_i32_0 : i32, i32
  }
  func.func @transform_4(%arg0: i32, %arg1: i32) -> (i32, i32) {
    %c0_i32 = arith.constant 0 : i32
    %c0_i32_0 = arith.constant 0 : i32
    return %arg0, %c0_i32 : i32, i32
  }
}

</mosaic_0001>

<llo_original>
// kernel: tpu_custom_call.1
$region0: #{tpu_custom_call.1}
  #allocation0 [shape = 'u32[]', space=smem, size = 0x4, offset = 0x4, fixed_abs, tag = 'smem constant byte address 0x4 - core index']
  #allocation1 [shape = 'u32[72,128]{1,0:T(1,128)}', space=vmem, size = 0x9000, scoped, tag = 'internal scratch']
  #allocation2 [shape = 'f32[16,128]{1,0:T(8,128)}', space=vmem, size = 0x2000, scoped, tag = 'scratch operand']
  %s0 = inlined_call_operand.hbm [shape: f32[16,256], index: 0, kind: input, shape index: {}]
  %s1 = inlined_call_operand.hbm [shape: f32[128,256], index: 1, kind: input, shape index: {}]
  %s2 = inlined_call_operand.vmem [shape: f32[1,128], index: 2, kind: input, shape index: {}]
  %s3 = inlined_call_operand.hbm [shape: f32[128,128], index: 3, kind: input, shape index: {}]
  %s4 = inlined_call_operand.hbm [shape: f32[16,128], index: 4, kind: output, shape index: {}]
  %s5 = sld [smem:[#allocation0]]
  $region69: #{tpu_custom_call.1} parent=0
    _
  %s7 = ssub.s32 1, %s5
  %s8 = scalar_select 0, %s7, %s5
  $region1: #{tpu_custom_call.1} parent=0
    #allocation3 [shape = 'u8[16384]{0}', space=vmem, size = 0x4000, scoped, tag = 'input window, operand 0']
    #allocation4 [shape = 's32[2]{0}', space=sflag, size = 0x8, scoped, tag = 'scoped memory for tpu_custom_call.1']
    #allocation5 [shape = 's32[2]{0}', space=sflag, size = 0x8, scoped, tag = 'scoped memory for tpu_custom_call.1']
    #allocation6 [shape = 'u8[131072]{0}', space=vmem, size = 0x20000, scoped, tag = 'input window, operand 1']
    #allocation7 [shape = 's32[2]{0}', space=sflag, size = 0x8, scoped, tag = 'scoped memory for tpu_custom_call.1']
    #allocation8 [shape = 'u8[65536]{0}', space=vmem, size = 0x10000, scoped, tag = 'input window, operand 3, single buffered']
    #allocation9 [shape = 'u8[8192]{0}', space=vmem, size = 0x2000, scoped, tag = 'output window, operand 0, single buffered']
    %9 = vsyncpa [#allocation4], 0
    %s10 = scalar_lea.sflag [#allocation4], 1
    %11 = vsyncpa %s10, 0
    %12 = vsyncpa [#allocation7], 0
    %s13 = scalar_lea.sflag [#allocation7], 1
    %14 = vsyncpa %s13, 0
    %15 = vsyncpa [#allocation5], 0
    loop: start=0, step=1, limit=4
    $region2: #{tpu_custom_call.1} parent=1 // loop_pre_header
      _
    $region3: #{tpu_custom_call.1} parent=1 // loop_header
      %s17 = sphi 0, %s21
      %p18 = scmp.ge.s32.totalorder %s17, 4
      %s24 = sphi 0, %s36
      %s25 = sphi 0, %s32
      %s26 = sphi 0, %s24
      %s27 = sphi 0, %s25
      %s28 = sphi 0, %s26
      %s29 = sphi 0, %s27
      %s41 = sphi 0, %s43
      %s44 = sphi 0, %s41
      %s45 = sphi 0, %s44
      %s61 = sphi 0, %s45
      %s67 = sphi 0, %s69
      %s70 = sphi 0, %s67
      %s71 = sphi 0, %s70
      %s87 = sphi 0, %s71
      %s91 = sphi 0, %s91
      %s93 = sphi 0, %s91
      %s94 = sphi 0, %s93
      %s108 = sphi 0, %s94
      %s112 = sphi 0, %s112
      %s114 = sphi 0, %s112
      %s115 = sphi 0, %s114
      %s129 = sphi 0, %s115
      %s135 = sphi 0, %s137
      %s138 = sphi 0, %s135
      %s139 = sphi 0, %s138
      %s155 = sphi 0, %s139
    $region4: #{tpu_custom_call.1} parent=1 // loop_header_branch
      %20 = sbr.rel (%p18) target = $region8
    $region5: #{tpu_custom_call.1} parent=1 // loop_body
      %s22 = ssub.s32 %s17, 1
      %s23 = ssub.s32 %s17, 2
      %s30 = sadd.s32 1, %s25
      %p31 = scmp.ge.s32.totalorder %s30, 2
      %s32 = scalar_select %p31, 0, %s30
      %s33 = sadd.s32 1, %s24
      %s34 = scalar_select %p31, %s33, %s24
      %p35 = scmp.ge.s32.totalorder %s34, 1
      %s36 = scalar_select %p35, 0, %s34
      %s37 = ssub.s32 %s24, %s36
      %s38 = ssub.s32 %s25, %s32
      %s39 = sor.u32 %s37, %s38
      %p40 = scmp.eq.s32.totalorder %s39, 0
      %s42 = sadd.s32 %s41, 1
      %s43 = scalar_select %p40, %s41, %s42
      %p46 = pneg %p40
      %p47 = scmp.eq.s32.totalorder %s17, 1
      %p48 = por %p46, %p47
      %p49 = scmp.ne.s32.totalorder %s41, %s44
      %p50 = scmp.eq.s32.totalorder %s17, 0
      %p51 = por %p49, %p50
      %p52 = scmp.ne.s32.totalorder %s41, %s44
      %p53 = scmp.eq.s32.totalorder %s22, 1
      %p54 = por %p52, %p53
      %p55 = scmp.ne.s32.totalorder %s44, %s45
      %p56 = scmp.eq.s32.totalorder %s22, 0
      %p57 = por %p55, %p56
      %p58 = scmp.ne.s32.totalorder %s44, %s45
      %p59 = scmp.eq.s32.totalorder %s23, 1
      %p60 = por %p58, %p59
      %p62 = scmp.ne.s32.totalorder %s45, %s61
      %p63 = scmp.eq.s32.totalorder %s23, 0
      %p64 = por %p62, %p63
      %s65 = ssub.s32 %s25, %s32
      %p66 = scmp.eq.s32.totalorder %s65, 0
      %s68 = sadd.s32 %s67, 1
      %s69 = scalar_select %p66, %s67, %s68
      %p72 = pneg %p66
      %p73 = scmp.eq.s32.totalorder %s17, 1
      %p74 = por %p72, %p73
      %p75 = scmp.ne.s32.totalorder %s67, %s70
      %p76 = scmp.eq.s32.totalorder %s17, 0
      %p77 = por %p75, %p76
      %p78 = scmp.ne.s32.totalorder %s67, %s70
      %p79 = scmp.eq.s32.totalorder %s22, 1
      %p80 = por %p78, %p79
      %p81 = scmp.ne.s32.totalorder %s70, %s71
      %p82 = scmp.eq.s32.totalorder %s22, 0
      %p83 = por %p81, %p82
      %p84 = scmp.ne.s32.totalorder %s70, %s71
      %p85 = scmp.eq.s32.totalorder %s23, 1
      %p86 = por %p84, %p85
      %p88 = scmp.ne.s32.totalorder %s71, %s87
      %p89 = scmp.eq.s32.totalorder %s23, 0
      %p90 = por %p88, %p89
      %s92 = sadd.s32 %s91, 1
      %p95 = scmp.eq.s32.totalorder %s17, 1
      %p96 = scmp.ne.s32.totalorder %s91, %s93
      %p97 = scmp.eq.s32.totalorder %s17, 0
      %p98 = por %p96, %p97
      %p99 = scmp.ne.s32.totalorder %s91, %s93
      %p100 = scmp.eq.s32.totalorder %s22, 1
      %p101 = por %p99, %p100
      %p102 = scmp.ne.s32.totalorder %s93, %s94
      %p103 = scmp.eq.s32.totalorder %s22, 0
      %p104 = por %p102, %p103
      %p105 = scmp.ne.s32.totalorder %s93, %s94
      %p106 = scmp.eq.s32.totalorder %s23, 1
      %p107 = por %p105, %p106
      %p109 = scmp.ne.s32.totalorder %s94, %s108
      %p110 = scmp.eq.s32.totalorder %s23, 0
      %p111 = por %p109, %p110
      %s113 = sadd.s32 %s112, 1
      %p116 = scmp.eq.s32.totalorder %s17, 1
      %p117 = scmp.ne.s32.totalorder %s112, %s114
      %p118 = scmp.eq.s32.totalorder %s17, 0
      %p119 = por %p117, %p118
      %p120 = scmp.ne.s32.totalorder %s112, %s114
      %p121 = scmp.eq.s32.totalorder %s22, 1
      %p122 = por %p120, %p121
      %p123 = scmp.ne.s32.totalorder %s114, %s115
      %p124 = scmp.eq.s32.totalorder %s22, 0
      %p125 = por %p123, %p124
      %p126 = scmp.ne.s32.totalorder %s114, %s115
      %p127 = scmp.eq.s32.totalorder %s23, 1
      %p128 = por %p126, %p127
      %p130 = scmp.ne.s32.totalorder %s115, %s129
      %p131 = scmp.eq.s32.totalorder %s23, 0
      %p132 = por %p130, %p131
      %s133 = ssub.s32 %s24, %s36
      %p134 = scmp.eq.s32.totalorder %s133, 0
      %s136 = sadd.s32 %s135, 1
      %s137 = scalar_select %p134, %s135, %s136
      %p140 = pneg %p134
      %p141 = scmp.eq.s32.totalorder %s17, 1
      %p142 = por %p140, %p141
      %p143 = scmp.ne.s32.totalorder %s135, %s138
      %p144 = scmp.eq.s32.totalorder %s17, 0
      %p145 = por %p143, %p144
      %p146 = scmp.ne.s32.totalorder %s135, %s138
      %p147 = scmp.eq.s32.totalorder %s22, 1
      %p148 = por %p146, %p147
      %p149 = scmp.ne.s32.totalorder %s138, %s139
      %p150 = scmp.eq.s32.totalorder %s22, 0
      %p151 = por %p149, %p150
      %p152 = scmp.ne.s32.totalorder %s138, %s139
      %p153 = scmp.eq.s32.totalorder %s23, 1
      %p154 = por %p152, %p153
      %p156 = scmp.ne.s32.totalorder %s139, %s155
      %p157 = scmp.eq.s32.totalorder %s23, 0
      %p158 = por %p156, %p157
      %p159 = scmp.le.s32.totalorder 1, %s17
      %p160 = scmp.lt.s32.totalorder %s17, 3
      %p161 = pnand %p159, %p160
      %p162 = pneg %p161
      // Predicated region
      $region9: #{tpu_custom_call.1} parent=5 // pred_check
        _
      $region10: #{tpu_custom_call.1} parent=5 // pred_check_branch
        %164 = sbr.rel (%p161) target = $region12
      $region11: #{tpu_custom_call.1} parent=5 // pred_region
        %s165 = ssub.s32 %s17, 1
        // Predicated region
        $region13: #{tpu_custom_call.1} parent=11 // pred_check
          %p166 = pneg %p104
        $region14: #{tpu_custom_call.1} parent=11 // pred_check_branch
          %168 = sbr.rel (%p166) target = $region16
        $region15: #{tpu_custom_call.1} parent=11 // pred_region
          _
        $region16: #{tpu_custom_call.1} parent=11 // pred_fallthru
          _
        // Predicated region
        $region17: #{tpu_custom_call.1} parent=11 // pred_check
          %p169 = pneg %p125
        $region18: #{tpu_custom_call.1} parent=11 // pred_check_branch
          %171 = sbr.rel (%p169) target = $region20
        $region19: #{tpu_custom_call.1} parent=11 // pred_region
          %173 = vsyncadd [#allocation7], 0
          %s174 = sshll.u32 %s3, 4
          %s175 = int_to_ptr.hbm [resolvable:$true] %s174
          %s176 = sshll.u32 [#allocation8], 4
          %s177 = int_to_ptr.vmem [resolvable:$true] %s176
          %182 = dma.hbm_to_vmem [thread:$0]  %s175, 2048, %s177, [#allocation7], 128, 128, 8
        $region20: #{tpu_custom_call.1} parent=11 // pred_fallthru
          _
      $region12: #{tpu_custom_call.1} parent=5 // pred_fallthru
        _
      %p183 = scmp.lt.s32.totalorder %s17, 2
      // Predicated region
      $region21: #{tpu_custom_call.1} parent=5 // pred_check
        %p184 = pneg %p183
      $region22: #{tpu_custom_call.1} parent=5 // pred_check_branch
        %186 = sbr.rel (%p184) target = $region24
      $region23: #{tpu_custom_call.1} parent=5 // pred_region
        // Predicated region
        $region25: #{tpu_custom_call.1} parent=23 // pred_check
          %p187 = pneg %p51
        $region26: #{tpu_custom_call.1} parent=23 // pred_check_branch
          %189 = sbr.rel (%p187) target = $region28
        $region27: #{tpu_custom_call.1} parent=23 // pred_region
          %s190 = sand.u32 %s41, 1
          %s191 = scalar_lea.sflag [#allocation4], %s190
          %s192 = sand.u32 %s41, 1
          %s193 = smul.addr %s192, 16
          %s194 = scalar_lea.vmem [#allocation3], %s193
          %s195 = smul.u32 2, %s24
          %197 = vsyncadd %s191, 0
          %s198 = smul.addr %s195, 2
          %s199 = sadd.s32 %s25, %s198
          %s200 = smul.addr %s199, 8
          %s201 = scalar_lea.hbm %s0, %s200
          %s202 = sshll.u32 %s201, 4
          %s203 = int_to_ptr.hbm [resolvable:$true] %s202
          %s204 = sshll.u32 %s194, 4
          %s205 = int_to_ptr.vmem [resolvable:$true] %s204
          %210 = dma.hbm_to_vmem [thread:$0]  %s203, 256, %s205, %s191, 256, 128, 8
        $region28: #{tpu_custom_call.1} parent=23 // pred_fallthru
          _
        // Predicated region
        $region29: #{tpu_custom_call.1} parent=23 // pred_check
          %p211 = pneg %p77
        $region30: #{tpu_custom_call.1} parent=23 // pred_check_branch
          %213 = sbr.rel (%p211) target = $region32
        $region31: #{tpu_custom_call.1} parent=23 // pred_region
          %s214 = sand.u32 %s17, 1
          %s215 = scalar_lea.sflag [#allocation7], %s214
          %s216 = sand.u32 %s67, 1
          %s217 = smul.addr %s216, 128
          %s218 = scalar_lea.vmem [#allocation6], %s217
          %220 = vsyncadd %s215, 0
          %s221 = smul.addr %s25, 8
          %s222 = scalar_lea.hbm %s1, %s221
          %s223 = sshll.u32 %s222, 4
          %s224 = int_to_ptr.hbm [resolvable:$true] %s223
          %s225 = sshll.u32 %s218, 4
          %s226 = int_to_ptr.vmem [resolvable:$true] %s225
          %231 = dma.hbm_to_vmem [thread:$0]  %s224, 2048, %s226, %s215, 256, 128, 8
        $region32: #{tpu_custom_call.1} parent=23 // pred_fallthru
          _
      $region24: #{tpu_custom_call.1} parent=5 // pred_fallthru
        _
      %p232 = scmp.le.s32.totalorder 1, %s17
      %p233 = scmp.lt.s32.totalorder %s17, 3
      %p234 = pnand %p232, %p233
      %p235 = pneg %p234
      // Predicated region
      $region33: #{tpu_custom_call.1} parent=5 // pred_check
        _
      $region34: #{tpu_custom_call.1} parent=5 // pred_check_branch
        %237 = sbr.rel (%p234) target = $region36
      $region35: #{tpu_custom_call.1} parent=5 // pred_region
        %s238 = ssub.s32 %s17, 1
        %s239 = sand.u32 %s44, 1
        %s240 = scalar_lea.sflag [#allocation4], %s239
        %s241 = sand.u32 %s44, 1
        %s242 = smul.addr %s241, 16
        %s243 = scalar_lea.vmem [#allocation3], %s242
        // Predicated region
        $region37: #{tpu_custom_call.1} parent=35 // pred_check
          %p244 = pneg %p57
        $region38: #{tpu_custom_call.1} parent=35 // pred_check_branch
          %246 = sbr.rel (%p244) target = $region40
        $region39: #{tpu_custom_call.1} parent=35 // pred_region
          %248 = dma.done %s240, 256
        $region40: #{tpu_custom_call.1} parent=35 // pred_fallthru
          _
        %s249 = sand.u32 %s22, 1
        %s250 = scalar_lea.sflag [#allocation7], %s249
        %s251 = sand.u32 %s70, 1
        %s252 = smul.addr %s251, 128
        %s253 = scalar_lea.vmem [#allocation6], %s252
        // Predicated region
        $region41: #{tpu_custom_call.1} parent=35 // pred_check
          %p254 = pneg %p83
        $region42: #{tpu_custom_call.1} parent=35 // pred_check_branch
          %256 = sbr.rel (%p254) target = $region44
        $region43: #{tpu_custom_call.1} parent=35 // pred_region
          %258 = dma.done %s250, 2048
        $region44: #{tpu_custom_call.1} parent=35 // pred_fallthru
          _
        // Predicated region
        $region45: #{tpu_custom_call.1} parent=35 // pred_check
          %p259 = pneg %p125
        $region46: #{tpu_custom_call.1} parent=35 // pred_check_branch
          %261 = sbr.rel (%p259) target = $region48
        $region47: #{tpu_custom_call.1} parent=35 // pred_region
          %263 = dma.done [#allocation7], 2048
        $region48: #{tpu_custom_call.1} parent=35 // pred_fallthru
          _
        %s264 = sand.u32 %s44, 1
        %s265 = scalar_lea.sflag [#allocation4], %s264
        %s266 = sand.u32 %s44, 1
        %s267 = smul.addr %s266, 16
        %s268 = scalar_lea.vmem [#allocation3], %s267
        %p269 = pneg %p57
        %p270 = pneg %p54
        %s271 = sand.u32 %s22, 1
        %s272 = scalar_lea.sflag [#allocation7], %s271
        %s273 = sand.u32 %s70, 1
        %s274 = smul.addr %s273, 128
        %s275 = scalar_lea.vmem [#allocation6], %s274
        %p276 = pneg %p83
        %p277 = pneg %p80
        %p278 = pneg %p104
        %p279 = pneg %p101
        %p280 = pneg %p125
        %p281 = pneg %p122
        %p282 = pneg %p151
        %p283 = pneg %p148
        %s284 = smul.u32 2, %s26
        %s285 = smul.u32 2, %s26
        %p286 = scmp.eq.s32.totalorder %s27, 0
        // Predicated region
        $region49: #{tpu_custom_call.1} parent=35 // pred_check
          %p287 = pneg %p286
        $region50: #{tpu_custom_call.1} parent=35 // pred_check_branch
          %289 = sbr.rel (%p287) target = $region52
        $region51: #{tpu_custom_call.1} parent=35 // pred_region
          %290 = vst [vmem:[#allocation2] sm:$0xff] 0.0
          %291 = vst [vmem:[#allocation2 + $0x8] sm:$0xff] 0.0
        $region52: #{tpu_custom_call.1} parent=35 // pred_fallthru
          _
        %v292 = vld [vmem:[#allocation2] sm:$0xff]
        %v293 = vld [vmem:[#allocation2 + $0x8] sm:$0xff]
        %v294 = vld [vmem:[%s243] sm:$0xff]
        %v295 = vld [vmem:[%s243 + $0x8] sm:$0xff]
        %v296 = vld [vmem:[%s253] sm:$0xff]
        %v297 = vld [vmem:[%s253 + $0x8] sm:$0xff]
        %v298 = vld [vmem:[%s253 + $0x10] sm:$0xff]
        %v299 = vld [vmem:[%s253 + $0x18] sm:$0xff]
        %v300 = vld [vmem:[%s253 + $0x20] sm:$0xff]
        %v301 = vld [vmem:[%s253 + $0x28] sm:$0xff]
        %v302 = vld [vmem:[%s253 + $0x30] sm:$0xff]
        %v303 = vld [vmem:[%s253 + $0x38] sm:$0xff]
        %v304 = vld [vmem:[%s253 + $0x40] sm:$0xff]
        %v305 = vld [vmem:[%s253 + $0x48] sm:$0xff]
        %v306 = vld [vmem:[%s253 + $0x50] sm:$0xff]
        %v307 = vld [vmem:[%s253 + $0x58] sm:$0xff]
        %v308 = vld [vmem:[%s253 + $0x60] sm:$0xff]
        %v309 = vld [vmem:[%s253 + $0x68] sm:$0xff]
        %v310 = vld [vmem:[%s253 + $0x70] sm:$0xff]
        %v311 = vld [vmem:[%s253 + $0x78] sm:$0xff]
        %312 = vmatpush.xpose.msra.mxu0 %v311
        %313 = vmatpush.xpose.msra.mxu0 %v310
        %314 = vmatpush.xpose.msra.mxu0 %v309
        %315 = vmatpush.xpose.msra.mxu0 %v308
        %316 = vmatpush.xpose.msra.mxu0 %v307
        %317 = vmatpush.xpose.msra.mxu0 %v306
        %318 = vmatpush.xpose.msra.mxu0 %v305
        %319 = vmatpush.xpose.msra.mxu0 %v304
        %320 = vmatpush.xpose.msra.mxu0 %v303
        %321 = vmatpush.xpose.msra.mxu0 %v302
        %322 = vmatpush.xpose.msra.mxu0 %v301
        %323 = vmatpush.xpose.msra.mxu0 %v300
        %324 = vmatpush.xpose.msra.mxu0 %v299
        %325 = vmatpush.xpose.msra.mxu0 %v298
        %326 = vmatpush.xpose.msra.mxu0 %v297
        %327 = vmatpush.xpose.msra.mxu0 %v296
        %328 = vmatmul.f32.gmra.mxu0 %v294
        %v329 = vpop.f32.mrf.mxu0
        %v330 = vadd.f32 0.0, %v329
        %331 = vmatmul.f32.gmra.mxu0 %v295
        %v332 = vpop.f32.mrf.mxu0
        %v333 = vadd.f32 0.0, %v332
        %334 = vdwg.mxu0
        %v335 = vadd.f32 %v292, %v330
        %v336 = vadd.f32 %v293, %v333
        %337 = vst [vmem:[#allocation2] sm:$0xff] %v335
        %338 = vst [vmem:[#allocation2 + $0x8] sm:$0xff] %v336
        %p339 = scmp.eq.s32.totalorder %s27, 1
        // Predicated region
        $region53: #{tpu_custom_call.1} parent=35 // pred_check
          %p340 = pneg %p339
        $region54: #{tpu_custom_call.1} parent=35 // pred_check_branch
          %342 = sbr.rel (%p340) target = $region56
        $region55: #{tpu_custom_call.1} parent=35 // pred_region
          %v343 = vld [vmem:[#allocation2] sm:$0xff]
          %v344 = vld [vmem:[#allocation2 + $0x8] sm:$0xff]
          %v345 = vld [vmem:[%s2] sm:$0x1]
          %v347 = vperm.slane %v345, 0
          %v349 = vadd.f32 %v343, %v347
          %v350 = vadd.f32 %v344, %v347
          %v351 = vld [vmem:[#allocation8] sm:$0xff]
          %v352 = vld [vmem:[#allocation8 + $0x8] sm:$0xff]
          %v353 = vld [vmem:[#allocation8 + $0x10] sm:$0xff]
          %v354 = vld [vmem:[#allocation8 + $0x18] sm:$0xff]
          %v355 = vld [vmem:[#allocation8 + $0x20] sm:$0xff]
          %v356 = vld [vmem:[#allocation8 + $0x28] sm:$0xff]
          %v357 = vld [vmem:[#allocation8 + $0x30] sm:$0xff]
          %v358 = vld [vmem:[#allocation8 + $0x38] sm:$0xff]
          %v359 = vld [vmem:[#allocation8 + $0x40] sm:$0xff]
          %v360 = vld [vmem:[#allocation8 + $0x48] sm:$0xff]
          %v361 = vld [vmem:[#allocation8 + $0x50] sm:$0xff]
          %v362 = vld [vmem:[#allocation8 + $0x58] sm:$0xff]
          %v363 = vld [vmem:[#allocation8 + $0x60] sm:$0xff]
          %v364 = vld [vmem:[#allocation8 + $0x68] sm:$0xff]
          %v365 = vld [vmem:[#allocation8 + $0x70] sm:$0xff]
          %v366 = vld [vmem:[#allocation8 + $0x78] sm:$0xff]
          %367 = vmatpush.xpose.msra.mxu0 %v366
          %368 = vmatpush.xpose.msra.mxu0 %v365
          %369 = vmatpush.xpose.msra.mxu0 %v364
          %370 = vmatpush.xpose.msra.mxu0 %v363
          %371 = vmatpush.xpose.msra.mxu0 %v362
          %372 = vmatpush.xpose.msra.mxu0 %v361
          %373 = vmatpush.xpose.msra.mxu0 %v360
          %374 = vmatpush.xpose.msra.mxu0 %v359
          %375 = vmatpush.xpose.msra.mxu0 %v358
          %376 = vmatpush.xpose.msra.mxu0 %v357
          %377 = vmatpush.xpose.msra.mxu0 %v356
          %378 = vmatpush.xpose.msra.mxu0 %v355
          %379 = vmatpush.xpose.msra.mxu0 %v354
          %380 = vmatpush.xpose.msra.mxu0 %v353
          %381 = vmatpush.xpose.msra.mxu0 %v352
          %382 = vmatpush.xpose.msra.mxu0 %v351
          %383 = vmatmul.f32.gmra.mxu0 %v349
          %v384 = vpop.f32.mrf.mxu0
          %v385 = vadd.f32 0.0, %v384
          %386 = vmatmul.f32.gmra.mxu0 %v350
          %v387 = vpop.f32.mrf.mxu0
          %v388 = vadd.f32 0.0, %v387
          %389 = vdwg.mxu0
          %390 = vst [vmem:[#allocation9] sm:$0xff] %v385
          %391 = vst [vmem:[#allocation9 + $0x8] sm:$0xff] %v388
        $region56: #{tpu_custom_call.1} parent=35 // pred_fallthru
          _
        // Predicated region
        $region57: #{tpu_custom_call.1} parent=35 // pred_check
          %p392 = pneg %p148
        $region58: #{tpu_custom_call.1} parent=35 // pred_check_branch
          %394 = sbr.rel (%p392) target = $region60
        $region59: #{tpu_custom_call.1} parent=35 // pred_region
          %s395 = smul.u32 2, %s26
          %397 = vsyncadd [#allocation5], 0
          %s398 = smul.addr %s395, 8
          %s399 = scalar_lea.hbm %s4, %s398
          %s400 = sshll.u32 [#allocation9], 4
          %s401 = int_to_ptr.vmem [resolvable:$true] %s400
          %s402 = sshll.u32 %s399, 4
          %s403 = int_to_ptr.hbm [resolvable:$true] %s402
          %408 = dma.vmem_to_hbm [thread:$0]  %s401, 256, %s403, [#allocation5], 128, 128, 8
        $region60: #{tpu_custom_call.1} parent=35 // pred_fallthru
          _
        // Predicated region
        $region61: #{tpu_custom_call.1} parent=35 // pred_check
          %p409 = pneg %p148
        $region62: #{tpu_custom_call.1} parent=35 // pred_check_branch
          %411 = sbr.rel (%p409) target = $region64
        $region63: #{tpu_custom_call.1} parent=35 // pred_region
          %413 = dma.done [#allocation5], 256
        $region64: #{tpu_custom_call.1} parent=35 // pred_fallthru
          _
      $region36: #{tpu_custom_call.1} parent=5 // pred_fallthru
        _
      %p414 = scmp.le.s32.totalorder 2, %s17
      // Predicated region
      $region65: #{tpu_custom_call.1} parent=5 // pred_check
        %p415 = pneg %p414
      $region66: #{tpu_custom_call.1} parent=5 // pred_check_branch
        %417 = sbr.rel (%p415) target = $region68
      $region67: #{tpu_custom_call.1} parent=5 // pred_region
        %s418 = ssub.s32 %s17, 2
      $region68: #{tpu_custom_call.1} parent=5 // pred_fallthru
        _
    $region6: #{tpu_custom_call.1} parent=1 // loop_footer
      %s21 = sadd.s32 1, %s17
    $region7: #{tpu_custom_call.1} parent=1 // loop_footer_branch
      %16 = sbr.rel target = $region3
    $region8: #{tpu_custom_call.1} parent=1 // loop_exit
      _
    %419 = vsyncpa [#allocation4], 1
    %s420 = scalar_lea.sflag [#allocation4], 1
    %421 = vsyncpa %s420, 1
    %422 = vsyncpa [#allocation7], 1
    %s423 = scalar_lea.sflag [#allocation7], 1
    %424 = vsyncpa %s423, 1
    %425 = vsyncpa [#allocation5], 1
    %s426 = scalar_lea.sflag [#allocation5], 1
    %427 = vsyncpa %s426, 1

</llo_original>
